<compile_context>
chip_gen: v5e
topology: v5e:2x2
jax: 0.10.0
libtpu: 0.0.40
codegen_flags: <defaults>
</compile_context>

<pallas_src>
import functools

import jax
import jax.numpy as jnp
from jax.experimental import pallas as pl
from jax.experimental.pallas import tpu as pltpu

BN_EPS = 1e-5
LEAKY_SLOPE = 0.01
_FUSED_FASTPATH_BYTES = 8 * 1024 * 1024   # fused path only if footprint <= this


# --------------------------------------------------------------------------- #
# helpers
# --------------------------------------------------------------------------- #
def _vmem_config():
    """(tile_budget_bytes, vmem_limit_bytes) per TPU generation."""
    vmem_cap = 64 * 1024 * 1024
    try:
        info = pltpu.get_tpu_info()
        vmem_cap = int(getattr(info, "vmem_capacity_bytes", vmem_cap))
    except Exception:
        pass
    if vmem_cap >= 96 * 1024 * 1024:          # v5e / v6e: 128 MiB physical VMEM
        return 24 * 1024 * 1024, 64 * 1024 * 1024
    return 12 * 1024 * 1024, 32 * 1024 * 1024  # v7x-class: 64 MiB physical VMEM


def _activate(y, act, use_act):
    if not use_act:
        return y
    if act == 'leaky':
        return jnp.maximum(y, LEAKY_SLOPE * y)
    if act == 'relu':
        return jnp.maximum(y, 0.0)
    if act == 'relu6':
        return jnp.clip(y, 0.0, 6.0)
    return y


def _pointwise(w, x, bias=None):
    """(Cout, Cin) f32 weights @ (Cin, M) activations -> (Cout, M) f32.

    Tiny channel counts use a VPU broadcast-MAC (bias folded into the init);
    larger channel counts go to the MXU. bf16 activations are fed to the MXU
    natively with an f32 accumulator.
    """
    cout, cin = w.shape
    if cin <= 8:
        xf = x.astype(jnp.float32)
        acc = w[:, 0:1] * xf[0:1, :]
        if bias is not None:
            acc = acc + bias
        for ci in range(1, cin):
            acc = acc + w[:, ci:ci + 1] * xf[ci:ci + 1, :]
        return acc
    if x.dtype == jnp.bfloat16:
        acc = jnp.dot(w.astype(jnp.bfloat16), x, preferred_element_type=jnp.float32)
    else:
        acc = jnp.dot(w.astype(jnp.float32), x.astype(jnp.float32),
                      preferred_element_type=jnp.float32)
    return acc if bias is None else acc + bias


def _choose_tile(m, cin, cout, itemsize, budget, override=None):
    """Lane-dense spatial tile (multiple of 128, or the full extent if m<128)."""
    if override is not None:
        return min(override, m) if m >= 128 else m
    if m <= 128:
        return m
    per_col = (2 * itemsize + 4) * (cin + cout)        # dbl-buffered blocks + f32 temps
    cap = budget // max(per_col, 1)
    cap = min(cap, 32768, (m // 128) * 128)
    cap = max((cap // 128) * 128, 128)
    # Prefer a tile that exactly divides m (no ragged tail) if one is near the cap.
    lo = max(cap // 2, 128)
    for cand in range(cap, lo - 1, -128):
        if m % cand == 0:
            return cand
    return cap   # ragged tail handled with cdiv grid + in-kernel masking


# --------------------------------------------------------------------------- #
# kernels
# --------------------------------------------------------------------------- #
def _fused_kernel(x_ref, w_ref, g_ref, b_ref, o_ref, *, act, use_act):
    """Single-call fast path: conv + exact (centered) batch stats + BN + act."""
    n = x_ref.shape[0]
    m = x_ref.shape[2]
    count = float(n * m)
    w = w_ref[...].astype(jnp.float32)                     # (Cout, Cin)

    ys = []
    total = None
    for i in range(n):                                     # n is small & static
        y = _pointwise(w, x_ref[i])                        # (Cout, M) f32
        ys.append(y)
        s = jnp.sum(y, axis=1, keepdims=True)              # (Cout, 1)
        total = s if total is None else total + s
    mean = total / count                                   # (Cout, 1)

    ssq = None
    for i in range(n):
        d = ys[i] - mean
        s2 = jnp.sum(d * d, axis=1, keepdims=True)
        ssq = s2 if ssq is None else ssq + s2
    var = ssq / count                                      # biased (training fwd)
    inv = jax.lax.rsqrt(var + BN_EPS)

    scale = g_ref[...].astype(jnp.float32) * inv           # (Cout, 1)
    bias = b_ref[...].astype(jnp.float32) - mean * scale   # (Cout, 1)
    for i in range(n):
        y = ys[i] * scale + bias
        y = _activate(y, act, use_act)
        o_ref[i] = y.astype(o_ref.dtype)


def _conv_stats_kernel(x_ref, w_ref, stats_ref, *, m, tm, gm_h, ragged):
    """Pass 1 (tiled path): pointwise conv + per-channel partial sum / sumsq."""
    j = pl.program_id(2)

    @pl.when(j == 0)
    def _():
        stats_ref[...] = jnp.zeros_like(stats_ref)

    x = x_ref[0]                                           # (Cin, tm) input dtype
    w = w_ref[...]                                         # (Cout, Cin) f32
    y = _pointwise(w, x)                                   # (Cout, tm) f32
    if ragged:
        s = pl.program_id(0)
        start = (s * gm_h + j) * tm
        col = jax.lax.broadcasted_iota(jnp.int32, (1, tm), 1) + start
        y = jnp.where(col < m, y, 0.0)                     # zero the OOB tail
    stats_ref[0, 0, :, 0:1] += jnp.sum(y, axis=1, keepdims=True)
    stats_ref[0, 0, :, 1:2] += jnp.sum(y * y, axis=1, keepdims=True)


def _conv_affine_act_kernel(x_ref, w_ref, b_ref, o_ref, *, act, use_act):
    """Pass 2 (tiled path): conv with BN-folded weights + bias + activation."""
    x = x_ref[0]                                           # (Cin, tm)
    w = w_ref[...]                                         # (Cout, Cin) f32, folded
    b = b_ref[...].astype(jnp.float32)                     # (Cout, 1)
    y = _pointwise(w, x, bias=b)                           # (Cout, tm) f32
    y = _activate(y, act, use_act)
    o_ref[0] = y.astype(o_ref.dtype)


# --------------------------------------------------------------------------- #
# wrapper
# --------------------------------------------------------------------------- #
def conv1x1_forward(x_nchw, conv_w, gamma, beta, stride=1, act='leaky',
                    use_relu=True, *, force_tiled=False, tile_override=None):
    """Equivalent of conv1x1(in_planes, out_planes, stride, act).forward(x) with
    BatchNorm2d in training mode (batch statistics, eps=1e-5), groups=1, no bias.

    x_nchw : (N, C_in, H, W)      conv_w : (C_out, C_in, 1, 1)
    gamma  : (C_out,) BN weight   beta   : (C_out,) BN bias
    returns: (N, C_out, Ho, Wo)  NCHW
    """
    assert conv_w.shape[2:] == (1, 1), "conv1x1 expects a 1x1 kernel"
    n, cin = x_nchw.shape[0], x_nchw.shape[1]
    cout = conv_w.shape[0]
    w2 = conv_w.reshape(cout, cin).astype(jnp.float32)
    g2 = gamma.reshape(cout, 1).astype(jnp.float32)
    b2 = beta.reshape(cout, 1).astype(jnp.float32)

    if stride > 1:
        # kernel_size=1, padding=0: stride is a pure spatial subsample.
        # TODO(synk): fold the subsample into the kernel BlockSpec to avoid this copy.
        x_nchw = x_nchw[:, :, ::stride, ::stride]
    ho, wo = x_nchw.shape[2], x_nchw.shape[3]
    m = ho * wo
    x_flat = x_nchw.reshape(n, cin, m)
    itemsize = x_nchw.dtype.itemsize

    tile_budget, vmem_limit = _vmem_config()

    # ---------------- fused VMEM-resident fast path ---------------- #
    fused_bytes = n * m * (cin * itemsize + cout * (8 + itemsize)) + cout * cin * 4
    if (not force_tiled) and n <= 8 and fused_bytes <= _FUSED_FASTPATH_BYTES:
        out_flat = pl.pallas_call(
            functools.partial(_fused_kernel, act=act, use_act=use_relu),
            out_shape=jax.ShapeDtypeStruct((n, cout, m), x_nchw.dtype),
            grid=(1,),
            in_specs=[pl.BlockSpec((n, cin, m), lambda i: (0, 0, 0)),
                      pl.BlockSpec((cout, cin), lambda i: (0, 0)),
                      pl.BlockSpec((cout, 1), lambda i: (0, 0)),
                      pl.BlockSpec((cout, 1), lambda i: (0, 0))],
            out_specs=pl.BlockSpec((n, cout, m), lambda i: (0, 0, 0)),
            compiler_params=pltpu.CompilerParams(
                dimension_semantics=("arbitrary",),
                vmem_limit_bytes=vmem_limit),
        )(x_flat, w2, g2, b2)
        return out_flat.reshape(n, cout, ho, wo)

    # ---------------- tiled two-pass path (large shapes) ---------------- #
    tm = _choose_tile(m, cin, cout, itemsize, tile_budget, override=tile_override)
    gm = -(-m // tm)                               # cdiv, no padding / extra copies
    ragged = (m % tm) != 0
    n_split = 2 if (gm % 2 == 0 and gm >= 4) else 1   # v7x: give pass 1 a 2nd parallel axis
    gm_h = gm // n_split

    # ---- pass 1: conv + per-channel partial statistics ----
    x_spec1 = pl.BlockSpec((1, cin, tm), lambda s, i, j: (i, 0, s * gm_h + j))
    w_spec1 = pl.BlockSpec((cout, cin), lambda s, i, j: (0, 0))
    stats = pl.pallas_call(
        functools.partial(_conv_stats_kernel, m=m, tm=tm, gm_h=gm_h, ragged=ragged),
        out_shape=jax.ShapeDtypeStruct((n_split, n, cout, 2), jnp.float32),
        grid=(n_split, n, gm_h),
        in_specs=[x_spec1, w_spec1],
        out_specs=pl.BlockSpec((1, 1, cout, 2), lambda s, i, j: (s, i, 0, 0)),
        compiler_params=pltpu.CompilerParams(
            dimension_semantics=("parallel", "parallel", "arbitrary"),
            vmem_limit_bytes=vmem_limit),
    )(x_flat, w2)

    # ---- tiny glue: fold training-mode BN into (scale, bias) ----
    tot = jnp.sum(stats, axis=(0, 1))                          # (Cout, 2)
    count = float(n * m)
    mean = tot[:, 0] / count
    # TODO(synk): E[y^2]-mean^2 can cancel for extremely large reductions;
    #             switch to per-tile centered stats (Chan) if that regime matters.
    var = jnp.maximum(tot[:, 1] / count - mean * mean, 0.0)    # biased var (train fwd)
    inv = jax.lax.rsqrt(var + BN_EPS)
    scale = gamma.astype(jnp.float32) * inv
    bias = (beta.astype(jnp.float32) - mean * scale).reshape(cout, 1)
    w_folded = w2 * scale[:, None]                             # (Cout, Cin)

    # ---- pass 2: conv with folded BN + activation ----
    out_flat = pl.pallas_call(
        functools.partial(_conv_affine_act_kernel, act=act, use_act=use_relu),
        out_shape=jax.ShapeDtypeStruct((n, cout, m), x_nchw.dtype),
        grid=(n, gm),
        in_specs=[pl.BlockSpec((1, cin, tm), lambda i, j: (i, 0, j)),
                  pl.BlockSpec((cout, cin), lambda i, j: (0, 0)),
                  pl.BlockSpec((cout, 1), lambda i, j: (0, 0))],
        out_specs=pl.BlockSpec((1, cout, tm), lambda i, j: (i, 0, j)),
        compiler_params=pltpu.CompilerParams(
            dimension_semantics=("parallel", "parallel"),
            vmem_limit_bytes=vmem_limit),
    )(x_flat, w_folded, bias)
    return out_flat.reshape(n, cout, ho, wo)


# --------------------------------------------------------------------------- #
# pure-JAX reference (matches PyTorch training-mode forward)
# --------------------------------------------------------------------------- #
def _reference_forward(x, conv_w, gamma, beta, stride=1, act='leaky', use_relu=True):
    y = jax.lax.conv_general_dilated(
        x, conv_w, (stride, stride), ((0, 0), (0, 0)),
        dimension_numbers=("NCHW", "OIHW", "NCHW"))
    mean = jnp.mean(y, axis=(0, 2, 3), keepdims=True)
    var = jnp.mean((y - mean) ** 2, axis=(0, 2, 3), keepdims=True)
    yn = (y - mean) * jax.lax.rsqrt(var + BN_EPS)
    yn = yn * gamma.reshape(1, -1, 1, 1) + beta.reshape(1, -1, 1, 1)
    if not use_relu:
        return yn
    if act == 'leaky':
        return jnp.where(yn >= 0, yn, LEAKY_SLOPE * yn)
    if act == 'relu':
        return jnp.maximum(yn, 0.0)
    if act == 'relu6':
        return jnp.clip(yn, 0.0, 6.0)
    return yn


# --------------------------------------------------------------------------- #
# self-test
# --------------------------------------------------------------------------- #
def _run_case(name, key, shape, cout, stride=1, force_tiled=False, tile_override=None):
    n, cin, h, w = shape
    kx, kw, kg, kb = jax.random.split(key, 4)
    x = jax.random.normal(kx, (n, cin, h, w), dtype=jnp.float32)
    conv_w = 0.1 * jax.random.normal(kw, (cout, cin, 1, 1), dtype=jnp.float32)
    gamma = 1.0 + 0.1 * jax.random.normal(kg, (cout,), dtype=jnp.float32)
    beta = 0.1 * jax.random.normal(kb, (cout,), dtype=jnp.float32)

    out = conv1x1_forward(x, conv_w, gamma, beta, stride=stride,
                          force_tiled=force_tiled, tile_override=tile_override)
    out = jax.block_until_ready(out)
    ref = _reference_forward(x, conv_w, gamma, beta, stride=stride)
    assert out.shape == ref.shape, f"{name}: shape {out.shape} vs {ref.shape}"
    ok = bool(jnp.allclose(out, ref, rtol=1e-4, atol=1e-4))
    assert ok, f"{name}: mismatch vs. reference"


if __name__ == "__main__":
    keys = jax.random.split(jax.random.PRNGKey(0), 5)
    # primary shapes consistent with the module: in_planes=4, out_planes=8, stride=1
    _run_case("fused_small",   keys[0], (2, 4, 16, 16), cout=8)
    # tiled two-pass path + v7x-style split-reduction axis (forced at small shapes)
    _run_case("tiled_split",   keys[1], (2, 4, 32, 32), cout=8,
              force_tiled=True, tile_override=128)
    # tiled path with a ragged (non multiple-of-128) spatial tail, masked in-kernel
    _run_case("tiled_ragged",  keys[2], (1, 4, 12, 12), cout=8,
              force_tiled=True, tile_override=128)
    # larger channel counts -> MXU branch of the fused path
    _run_case("fused_mxu",     keys[3], (1, 32, 8, 8), cout=64)
    # stride=2 variant
    _run_case("fused_stride2", keys[4], (2, 4, 16, 16), cout=8, stride=2)
    print("KERNEL_OK")
</pallas_src>

<mosaic_0001>
module attributes {stable_mosaic.version = 11 : i64} {
  func.func @_fused_kernel(%arg0: i32, %arg1: memref<2x4x256xf32, #tpu.memory_space<vmem>>, %arg2: memref<8x4xf32, #tpu.memory_space<vmem>>, %arg3: memref<8x1xf32, #tpu.memory_space<vmem>>, %arg4: memref<8x1xf32, #tpu.memory_space<vmem>>, %arg5: memref<2x8x256xf32, #tpu.memory_space<vmem>>) attributes {dimension_semantics = [#tpu.dimension_semantics<arbitrary>], iteration_bounds = array<i64: 1>, scalar_prefetch = 0 : i64, scratch_operands = 0 : i64, tpu.core_type = #tpu.core_type<tc>, window_params = [{pipeline_mode = #tpu.pipeline_mode<synchronous>, transform_indices = @transform_0, window_bounds = array<i64: 2, 4, 256>}, {pipeline_mode = #tpu.pipeline_mode<synchronous>, transform_indices = @transform_1, window_bounds = array<i64: 8, 4>}, {pipeline_mode = #tpu.pipeline_mode<synchronous>, transform_indices = @transform_2, window_bounds = array<i64: 8, 1>}, {pipeline_mode = #tpu.pipeline_mode<synchronous>, transform_indices = @transform_3, window_bounds = array<i64: 8, 1>}, {pipeline_mode = #tpu.pipeline_mode<synchronous>, transform_indices = @transform_4, window_bounds = array<i64: 2, 8, 256>}]} {
    %c0 = arith.constant 0 : index
    %c0_0 = arith.constant 0 : index
    %0 = vector.load %arg2[%c0, %c0_0] : memref<8x4xf32, #tpu.memory_space<vmem>>, vector<8x4xf32>
    %c0_1 = arith.constant 0 : index
    %c0_2 = arith.constant 0 : index
    %c0_3 = arith.constant 0 : index
    %1 = vector.load %arg1[%c0_1, %c0_2, %c0_3] : memref<2x4x256xf32, #tpu.memory_space<vmem>>, vector<1x4x256xf32>
    %2 = vector.shape_cast %1 : vector<1x4x256xf32> to vector<4x256xf32>
    %3 = vector.extract_strided_slice %0 {offsets = [0, 0], sizes = [8, 1], strides = [1, 1]} : vector<8x4xf32> to vector<8x1xf32>
    %4 = vector.extract_strided_slice %2 {offsets = [0, 0], sizes = [1, 256], strides = [1, 1]} : vector<4x256xf32> to vector<1x256xf32>
    %5 = vector.broadcast %3 : vector<8x1xf32> to vector<8x256xf32>
    %6 = vector.broadcast %4 : vector<1x256xf32> to vector<8x256xf32>
    %7 = arith.mulf %5, %6 : vector<8x256xf32>
    %8 = vector.extract_strided_slice %0 {offsets = [0, 1], sizes = [8, 1], strides = [1, 1]} : vector<8x4xf32> to vector<8x1xf32>
    %9 = vector.extract_strided_slice %2 {offsets = [1, 0], sizes = [1, 256], strides = [1, 1]} : vector<4x256xf32> to vector<1x256xf32>
    %10 = vector.broadcast %8 : vector<8x1xf32> to vector<8x256xf32>
    %11 = vector.broadcast %9 : vector<1x256xf32> to vector<8x256xf32>
    %12 = arith.mulf %10, %11 : vector<8x256xf32>
    %13 = arith.addf %7, %12 : vector<8x256xf32>
    %14 = vector.extract_strided_slice %0 {offsets = [0, 2], sizes = [8, 1], strides = [1, 1]} : vector<8x4xf32> to vector<8x1xf32>
    %15 = vector.extract_strided_slice %2 {offsets = [2, 0], sizes = [1, 256], strides = [1, 1]} : vector<4x256xf32> to vector<1x256xf32>
    %16 = vector.broadcast %14 : vector<8x1xf32> to vector<8x256xf32>
    %17 = vector.broadcast %15 : vector<1x256xf32> to vector<8x256xf32>
    %18 = arith.mulf %16, %17 : vector<8x256xf32>
    %19 = arith.addf %13, %18 : vector<8x256xf32>
    %20 = vector.extract_strided_slice %0 {offsets = [0, 3], sizes = [8, 1], strides = [1, 1]} : vector<8x4xf32> to vector<8x1xf32>
    %21 = vector.extract_strided_slice %2 {offsets = [3, 0], sizes = [1, 256], strides = [1, 1]} : vector<4x256xf32> to vector<1x256xf32>
    %22 = vector.broadcast %20 : vector<8x1xf32> to vector<8x256xf32>
    %23 = vector.broadcast %21 : vector<1x256xf32> to vector<8x256xf32>
    %24 = arith.mulf %22, %23 : vector<8x256xf32>
    %25 = arith.addf %19, %24 : vector<8x256xf32>
    %cst = arith.constant dense<0.000000e+00> : vector<8xf32>
    %26 = vector.multi_reduction <add>, %25, %cst [1] : vector<8x256xf32> to vector<8xf32>
    %27 = vector.shape_cast %26 : vector<8xf32> to vector<8x1xf32>
    %c1 = arith.constant 1 : index
    %c0_4 = arith.constant 0 : index
    %c0_5 = arith.constant 0 : index
    %28 = vector.load %arg1[%c1, %c0_4, %c0_5] : memref<2x4x256xf32, #tpu.memory_space<vmem>>, vector<1x4x256xf32>
    %29 = vector.shape_cast %28 : vector<1x4x256xf32> to vector<4x256xf32>
    %30 = vector.extract_strided_slice %0 {offsets = [0, 0], sizes = [8, 1], strides = [1, 1]} : vector<8x4xf32> to vector<8x1xf32>
    %31 = vector.extract_strided_slice %29 {offsets = [0, 0], sizes = [1, 256], strides = [1, 1]} : vector<4x256xf32> to vector<1x256xf32>
    %32 = vector.broadcast %30 : vector<8x1xf32> to vector<8x256xf32>
    %33 = vector.broadcast %31 : vector<1x256xf32> to vector<8x256xf32>
    %34 = arith.mulf %32, %33 : vector<8x256xf32>
    %35 = vector.extract_strided_slice %0 {offsets = [0, 1], sizes = [8, 1], strides = [1, 1]} : vector<8x4xf32> to vector<8x1xf32>
    %36 = vector.extract_strided_slice %29 {offsets = [1, 0], sizes = [1, 256], strides = [1, 1]} : vector<4x256xf32> to vector<1x256xf32>
    %37 = vector.broadcast %35 : vector<8x1xf32> to vector<8x256xf32>
    %38 = vector.broadcast %36 : vector<1x256xf32> to vector<8x256xf32>
    %39 = arith.mulf %37, %38 : vector<8x256xf32>
    %40 = arith.addf %34, %39 : vector<8x256xf32>
    %41 = vector.extract_strided_slice %0 {offsets = [0, 2], sizes = [8, 1], strides = [1, 1]} : vector<8x4xf32> to vector<8x1xf32>
    %42 = vector.extract_strided_slice %29 {offsets = [2, 0], sizes = [1, 256], strides = [1, 1]} : vector<4x256xf32> to vector<1x256xf32>
    %43 = vector.broadcast %41 : vector<8x1xf32> to vector<8x256xf32>
    %44 = vector.broadcast %42 : vector<1x256xf32> to vector<8x256xf32>
    %45 = arith.mulf %43, %44 : vector<8x256xf32>
    %46 = arith.addf %40, %45 : vector<8x256xf32>
    %47 = vector.extract_strided_slice %0 {offsets = [0, 3], sizes = [8, 1], strides = [1, 1]} : vector<8x4xf32> to vector<8x1xf32>
    %48 = vector.extract_strided_slice %29 {offsets = [3, 0], sizes = [1, 256], strides = [1, 1]} : vector<4x256xf32> to vector<1x256xf32>
    %49 = vector.broadcast %47 : vector<8x1xf32> to vector<8x256xf32>
    %50 = vector.broadcast %48 : vector<1x256xf32> to vector<8x256xf32>
    %51 = arith.mulf %49, %50 : vector<8x256xf32>
    %52 = arith.addf %46, %51 : vector<8x256xf32>
    %cst_6 = arith.constant dense<0.000000e+00> : vector<8xf32>
    %53 = vector.multi_reduction <add>, %52, %cst_6 [1] : vector<8x256xf32> to vector<8xf32>
    %54 = vector.shape_cast %53 : vector<8xf32> to vector<8x1xf32>
    %55 = arith.addf %27, %54 : vector<8x1xf32>
    %cst_7 = arith.constant 5.120000e+02 : f32
    %56 = vector.broadcast %cst_7 : f32 to vector<8x1xf32>
    %57 = arith.divf %55, %56 : vector<8x1xf32>
    %58 = vector.broadcast %57 : vector<8x1xf32> to vector<8x256xf32>
    %59 = arith.subf %25, %58 : vector<8x256xf32>
    %60 = arith.mulf %59, %59 : vector<8x256xf32>
    %cst_8 = arith.constant dense<0.000000e+00> : vector<8xf32>
    %61 = vector.multi_reduction <add>, %60, %cst_8 [1] : vector<8x256xf32> to vector<8xf32>
    %62 = vector.shape_cast %61 : vector<8xf32> to vector<8x1xf32>
    %63 = vector.broadcast %57 : vector<8x1xf32> to vector<8x256xf32>
    %64 = arith.subf %52, %63 : vector<8x256xf32>
    %65 = arith.mulf %64, %64 : vector<8x256xf32>
    %cst_9 = arith.constant dense<0.000000e+00> : vector<8xf32>
    %66 = vector.multi_reduction <add>, %65, %cst_9 [1] : vector<8x256xf32> to vector<8xf32>
    %67 = vector.shape_cast %66 : vector<8xf32> to vector<8x1xf32>
    %68 = arith.addf %62, %67 : vector<8x1xf32>
    %cst_10 = arith.constant 5.120000e+02 : f32
    %69 = vector.broadcast %cst_10 : f32 to vector<8x1xf32>
    %70 = arith.divf %68, %69 : vector<8x1xf32>
    %cst_11 = arith.constant 9.99999974E-6 : f32
    %71 = vector.broadcast %cst_11 : f32 to vector<8x1xf32>
    %72 = arith.addf %70, %71 : vector<8x1xf32>
    %73 = math.rsqrt %72 : vector<8x1xf32>
    %c0_12 = arith.constant 0 : index
    %c0_13 = arith.constant 0 : index
    %74 = vector.load %arg3[%c0_12, %c0_13] : memref<8x1xf32, #tpu.memory_space<vmem>>, vector<8x1xf32>
    %75 = arith.mulf %74, %73 : vector<8x1xf32>
    %c0_14 = arith.constant 0 : index
    %c0_15 = arith.constant 0 : index
    %76 = vector.load %arg4[%c0_14, %c0_15] : memref<8x1xf32, #tpu.memory_space<vmem>>, vector<8x1xf32>
    %77 = arith.mulf %57, %75 : vector<8x1xf32>
    %78 = arith.subf %76, %77 : vector<8x1xf32>
    %79 = vector.broadcast %75 : vector<8x1xf32> to vector<8x256xf32>
    %80 = arith.mulf %25, %79 : vector<8x256xf32>
    %81 = vector.broadcast %78 : vector<8x1xf32> to vector<8x256xf32>
    %82 = arith.addf %80, %81 : vector<8x256xf32>
    %cst_16 = arith.constant 0.00999999977 : f32
    %83 = vector.broadcast %cst_16 : f32 to vector<8x256xf32>
    %84 = arith.mulf %83, %82 : vector<8x256xf32>
    %85 = arith.maximumf %82, %84 : vector<8x256xf32>
    %c0_17 = arith.constant 0 : index
    %c0_18 = arith.constant 0 : index
    %c0_19 = arith.constant 0 : index
    %86 = vector.load %arg5[%c0_17, %c0_18, %c0_19] : memref<2x8x256xf32, #tpu.memory_space<vmem>>, vector<1x8x256xf32>
    %87 = vector.shape_cast %86 : vector<1x8x256xf32> to vector<8x256xf32>
    %88 = vector.shape_cast %85 : vector<8x256xf32> to vector<1x8x256xf32>
    tpu.vector_store %arg5[%c0_17, %c0_18, %c0_19], %88 {strides = array<i32>} : memref<2x8x256xf32, #tpu.memory_space<vmem>>, vector<1x8x256xf32>,
    %89 = vector.broadcast %75 : vector<8x1xf32> to vector<8x256xf32>
    %90 = arith.mulf %52, %89 : vector<8x256xf32>
    %91 = vector.broadcast %78 : vector<8x1xf32> to vector<8x256xf32>
    %92 = arith.addf %90, %91 : vector<8x256xf32>
    %cst_20 = arith.constant 0.00999999977 : f32
    %93 = vector.broadcast %cst_20 : f32 to vector<8x256xf32>
    %94 = arith.mulf %93, %92 : vector<8x256xf32>
    %95 = arith.maximumf %92, %94 : vector<8x256xf32>
    %c1_21 = arith.constant 1 : index
    %c0_22 = arith.constant 0 : index
    %c0_23 = arith.constant 0 : index
    %96 = vector.load %arg5[%c1_21, %c0_22, %c0_23] : memref<2x8x256xf32, #tpu.memory_space<vmem>>, vector<1x8x256xf32>
    %97 = vector.shape_cast %96 : vector<1x8x256xf32> to vector<8x256xf32>
    %98 = vector.shape_cast %95 : vector<8x256xf32> to vector<1x8x256xf32>
    tpu.vector_store %arg5[%c1_21, %c0_22, %c0_23], %98 {strides = array<i32>} : memref<2x8x256xf32, #tpu.memory_space<vmem>>, vector<1x8x256xf32>,
    return
  }
  func.func @transform_0(%arg0: i32) -> (i32, i32, i32) {
    %c0_i32 = arith.constant 0 : i32
    %c0_i32_0 = arith.constant 0 : i32
    %c0_i32_1 = arith.constant 0 : i32
    %c0_i32_2 = arith.constant 0 : i32
    return %c0_i32, %c0_i32_0, %c0_i32_1 : i32, i32, i32
  }
  func.func @transform_1(%arg0: i32) -> (i32, i32) {
    %c0_i32 = arith.constant 0 : i32
    %c0_i32_0 = arith.constant 0 : i32
    %c0_i32_1 = arith.constant 0 : i32
    return %c0_i32, %c0_i32_0 : i32, i32
  }
  func.func @transform_2(%arg0: i32) -> (i32, i32) {
    %c0_i32 = arith.constant 0 : i32
    %c0_i32_0 = arith.constant 0 : i32
    %c0_i32_1 = arith.constant 0 : i32
    return %c0_i32, %c0_i32_0 : i32, i32
  }
  func.func @transform_3(%arg0: i32) -> (i32, i32) {
    %c0_i32 = arith.constant 0 : i32
    %c0_i32_0 = arith.constant 0 : i32
    %c0_i32_1 = arith.constant 0 : i32
    return %c0_i32, %c0_i32_0 : i32, i32
  }
  func.func @transform_4(%arg0: i32) -> (i32, i32, i32) {
    %c0_i32 = arith.constant 0 : i32
    %c0_i32_0 = arith.constant 0 : i32
    %c0_i32_1 = arith.constant 0 : i32
    %c0_i32_2 = arith.constant 0 : i32
    return %c0_i32, %c0_i32_0, %c0_i32_1 : i32, i32, i32
  }
}

</mosaic_0001>

<llo_original>
// kernel: tpu_custom_call.1
$region0: #{tpu_custom_call.1}
  #allocation0 [shape = 'u32[]', space=smem, size = 0x4, offset = 0x4, fixed_abs, tag = 'smem constant byte address 0x4 - core index']
  #allocation1 [shape = 'u32[72,128]{1,0:T(1,128)}', space=vmem, size = 0x9000, scoped, tag = 'internal scratch']
  %s0 = inlined_call_operand.vmem [shape: f32[2,4,256], index: 0, kind: input, shape index: {}]
  %s1 = inlined_call_operand.vmem [shape: f32[8,4], index: 1, kind: input, shape index: {}]
  %s2 = inlined_call_operand.vmem [shape: f32[8,1], index: 2, kind: input, shape index: {}]
  %s3 = inlined_call_operand.vmem [shape: f32[8,1], index: 3, kind: input, shape index: {}]
  %s4 = inlined_call_operand.hbm [shape: f32[2,8,256], index: 4, kind: output, shape index: {}]
  %s5 = sld [smem:[#allocation0]]
  $region26: #{tpu_custom_call.1} parent=0
    _
  %s7 = ssub.s32 1, %s5
  %s8 = scalar_select 0, %s7, %s5
  $region1: #{tpu_custom_call.1} parent=0
    #allocation2 [shape = 'u8[16384]{0}', space=vmem, size = 0x4000, scoped, tag = 'output window, operand 0, single buffered']
    #allocation3 [shape = 's32[1]{0}', space=sflag, size = 0x4, scoped, tag = 'scoped memory for tpu_custom_call.1']
    %9 = vsyncpa [#allocation3], 0
    // Predicated region
    $region2: #{tpu_custom_call.1} parent=1 // pred_check
      _
    $region3: #{tpu_custom_call.1} parent=1 // pred_check_branch
      %11 = sbr.rel (0) target = $region5
    $region4: #{tpu_custom_call.1} parent=1 // pred_region
      _
    $region5: #{tpu_custom_call.1} parent=1 // pred_fallthru
      _
    // Predicated region
    $region6: #{tpu_custom_call.1} parent=1 // pred_check
      _
    $region7: #{tpu_custom_call.1} parent=1 // pred_check_branch
      %13 = sbr.rel (0) target = $region9
    $region8: #{tpu_custom_call.1} parent=1 // pred_region
      _
    $region9: #{tpu_custom_call.1} parent=1 // pred_fallthru
      _
    // Predicated region
    $region10: #{tpu_custom_call.1} parent=1 // pred_check
      _
    $region11: #{tpu_custom_call.1} parent=1 // pred_check_branch
      %15 = sbr.rel (0) target = $region13
    $region12: #{tpu_custom_call.1} parent=1 // pred_region
      _
    $region13: #{tpu_custom_call.1} parent=1 // pred_fallthru
      _
    // Predicated region
    $region14: #{tpu_custom_call.1} parent=1 // pred_check
      _
    $region15: #{tpu_custom_call.1} parent=1 // pred_check_branch
      %17 = sbr.rel (0) target = $region17
    $region16: #{tpu_custom_call.1} parent=1 // pred_region
      _
    $region17: #{tpu_custom_call.1} parent=1 // pred_fallthru
      _
    %v18 = vld [vmem:[%s1] sm:$0xff]
    %v19 = vld [vmem:[%s0] sm:$0xff]
    %21 = vset.pattern.permute.xlu0 0
    %22 = vperm.xlu0 %21, %v18
    %v23 = vpop.permute.xlu0 %22
    %v26 = vperm.slane %v19, 0
    %v27 = vperm.slane %v19, 4
    %v30 = vperm.slane %v26, 0
    %v31 = vperm.slane %v27, 0
    %v32 = vmul.f32 %v23, %v30
    %v33 = vmul.f32 %v23, %v31
    %34 = vset.pattern.permute.xlu0 1
    %35 = vperm.xlu0 %34, %v18
    %v36 = vpop.permute.xlu0 %35
    %v38 = vperm.slane %v19, 1
    %v39 = vperm.slane %v19, 5
    %v42 = vperm.slane %v38, 1
    %v43 = vperm.slane %v39, 1
    %v44 = vmul.f32 %v36, %v42
    %v45 = vmul.f32 %v36, %v43
    %v46 = vadd.f32 %v32, %v44
    %v47 = vadd.f32 %v33, %v45
    %48 = vset.pattern.permute.xlu0 2
    %49 = vperm.xlu0 %48, %v18
    %v50 = vpop.permute.xlu0 %49
    %v52 = vperm.slane %v19, 2
    %v53 = vperm.slane %v19, 6
    %v56 = vperm.slane %v52, 2
    %v57 = vperm.slane %v53, 2
    %v58 = vmul.f32 %v50, %v56
    %v59 = vmul.f32 %v50, %v57
    %v60 = vadd.f32 %v46, %v58
    %v61 = vadd.f32 %v47, %v59
    %62 = vset.pattern.permute.xlu0 3
    %63 = vperm.xlu0 %62, %v18
    %v64 = vpop.permute.xlu0 %63
    %v66 = vperm.slane %v19, 3
    %v67 = vperm.slane %v19, 7
    %v70 = vperm.slane %v66, 3
    %v71 = vperm.slane %v67, 3
    %v72 = vmul.f32 %v64, %v70
    %v73 = vmul.f32 %v64, %v71
    %v74 = vadd.f32 %v60, %v72
    %v75 = vadd.f32 %v61, %v73
    %v76 = vadd.f32 %v74, %v75
    %77 = vadd.xlane.f32.xlu0 %v76
    %v78 = vpop.xlane.xlu0 %77
    %s79 = scalar_lea.vmem %s0, 8
    %v80 = vld [vmem:[%s79] sm:$0xff]
    %v82 = vperm.slane %v80, 0
    %v83 = vperm.slane %v80, 4
    %v86 = vperm.slane %v82, 0
    %v87 = vperm.slane %v83, 0
    %v88 = vmul.f32 %v23, %v86
    %v89 = vmul.f32 %v23, %v87
    %v90 = vperm.slane %v80, 1
    %v91 = vperm.slane %v80, 5
    %v94 = vperm.slane %v90, 1
    %v95 = vperm.slane %v91, 1
    %v96 = vmul.f32 %v36, %v94
    %v97 = vmul.f32 %v36, %v95
    %v98 = vadd.f32 %v88, %v96
    %v99 = vadd.f32 %v89, %v97
    %v100 = vperm.slane %v80, 2
    %v101 = vperm.slane %v80, 6
    %v104 = vperm.slane %v100, 2
    %v105 = vperm.slane %v101, 2
    %v106 = vmul.f32 %v50, %v104
    %v107 = vmul.f32 %v50, %v105
    %v108 = vadd.f32 %v98, %v106
    %v109 = vadd.f32 %v99, %v107
    %v110 = vperm.slane %v80, 3
    %v111 = vperm.slane %v80, 7
    %v114 = vperm.slane %v110, 3
    %v115 = vperm.slane %v111, 3
    %v116 = vmul.f32 %v64, %v114
    %v117 = vmul.f32 %v64, %v115
    %v118 = vadd.f32 %v108, %v116
    %v119 = vadd.f32 %v109, %v117
    %v120 = vadd.f32 %v118, %v119
    %121 = vadd.xlane.f32.xlu0 %v120
    %v122 = vpop.xlane.xlu0 %121
    %v123 = vadd.f32 %v78, %v122
    %v124 = vrcp.pop 512.0
    %v125 = vmul.f32 512.0, %v124
    %v126 = vsub.f32 1.0, %v125
    %v127 = vmul.f32 %v124, %v126
    %v128 = vadd.f32 %v124, %v127
    %vm129 = vweird.f32 %v124
    %v130 = vsel %vm129, %v124, %v128
    %v131 = vmul.f32 %v123, %v130
    %v132 = vsub.f32 %v74, %v131
    %v133 = vsub.f32 %v75, %v131
    %v134 = vmul.f32 %v132, %v132
    %v135 = vmul.f32 %v133, %v133
    %v136 = vadd.f32 %v134, %v135
    %137 = vadd.xlane.f32.xlu0 %v136
    %v138 = vpop.xlane.xlu0 %137
    %v139 = vsub.f32 %v118, %v131
    %v140 = vsub.f32 %v119, %v131
    %v141 = vmul.f32 %v139, %v139
    %v142 = vmul.f32 %v140, %v140
    %v143 = vadd.f32 %v141, %v142
    %144 = vadd.xlane.f32.xlu0 %v143
    %v145 = vpop.xlane.xlu0 %144
    %v146 = vadd.f32 %v138, %v145
    %v147 = vmul.f32 %v146, %v130
    %v148 = vadd.f32 %v147, 1e-05
    %v149 = vrsqrt.pop %v148
    %v150 = vmul.f32 %v149, %v148
    %v151 = vmul.f32 %v150, %v149
    %v152 = vmul.f32 0.5, %v151
    %v153 = vsub.f32 1.5, %v152
    %v154 = vmul.f32 %v149, %v153
    %vm155 = vweird.f32 %v148
    %vm156 = vweird.f32 %v149
    %vm157 = vmor %vm155, %vm156
    %v158 = vsel %vm157, %v149, %v154
    %v159 = vld [vmem:[%s2] sm:$0xff]
    %v160 = vmul.f32 %v159, %v158
    %v161 = vld [vmem:[%s3] sm:$0xff]
    %v162 = vmul.f32 %v131, %v160
    %v163 = vsub.f32 %v161, %v162
    %165 = vset.pattern.permute.xlu0 0
    %166 = vperm.xlu0 %165, %v160
    %v167 = vpop.permute.xlu0 %166
    %v169 = vmul.f32 %v74, %v167
    %v170 = vmul.f32 %v75, %v167
    %172 = vset.pattern.permute.xlu0 0
    %173 = vperm.xlu0 %172, %v163
    %v174 = vpop.permute.xlu0 %173
    %v176 = vadd.f32 %v169, %v174
    %v177 = vadd.f32 %v170, %v174
    %v178 = vmul.f32 %v176, 0.01
    %v179 = vmul.f32 %v177, 0.01
    %v180 = vmax.f32 %v176, %v178
    %v181 = vmax.f32 %v177, %v179
    %182 = vst [vmem:[#allocation2] sm:$0xff] %v180
    %183 = vst [vmem:[#allocation2 + $0x8] sm:$0xff] %v181
    %v184 = vmul.f32 %v118, %v167
    %v185 = vmul.f32 %v119, %v167
    %v186 = vadd.f32 %v184, %v174
    %v187 = vadd.f32 %v185, %v174
    %v188 = vmul.f32 %v186, 0.01
    %v189 = vmul.f32 %v187, 0.01
    %v190 = vmax.f32 %v186, %v188
    %v191 = vmax.f32 %v187, %v189
    %s192 = scalar_lea.vmem [#allocation2], 16
    %193 = vst [vmem:[%s192] sm:$0xff] %v190
    %194 = vst [vmem:[%s192 + $0x8] sm:$0xff] %v191
    // Predicated region
    $region18: #{tpu_custom_call.1} parent=1 // pred_check
      _
    $region19: #{tpu_custom_call.1} parent=1 // pred_check_branch
      %196 = sbr.rel (0) target = $region21
    $region20: #{tpu_custom_call.1} parent=1 // pred_region
      %198 = vsyncadd [#allocation3], 0
      %s199 = sshll.u32 [#allocation2], 4
      %s200 = int_to_ptr.vmem [resolvable:$true] %s199
      %s201 = sshll.u32 %s4, 4
      %s202 = int_to_ptr.hbm [resolvable:$true] %s201
      %207 = dma.vmem_to_hbm [thread:$0]  %s200, 512, %s202, [#allocation3], 256, 256, 16
    $region21: #{tpu_custom_call.1} parent=1 // pred_fallthru
      _
    // Predicated region
    $region22: #{tpu_custom_call.1} parent=1 // pred_check
      _
    $region23: #{tpu_custom_call.1} parent=1 // pred_check_branch
      %209 = sbr.rel (0) target = $region25
    $region24: #{tpu_custom_call.1} parent=1 // pred_region
      %211 = dma.done [#allocation3], 512
    $region25: #{tpu_custom_call.1} parent=1 // pred_fallthru
      _
    %212 = vsyncpa [#allocation3], 1

</llo_original>
